<compile_context>
chip_gen: v7x
topology: tpu7x:2x2x1
jax: 0.10.0
libtpu: 0.0.40
codegen_flags: <defaults>
</compile_context>

<pallas_src>
import functools

import jax
import jax.numpy as jnp
from jax.experimental import pallas as pl
from jax.experimental.pallas import tpu as pltpu


def _round_up(n, m):
    return ((n + m - 1) // m) * m


def _mlp_softmax_kernel(x_ref, w1_ref, b1_ref, w2_ref, b2_ref, w3_ref, b3_ref,
                        o_ref):
    x = x_ref[...]                                      # (TB, num_inputs)

    # Linear(num_inputs, 5) + ReLU  (accumulate in f32 on the MXU)
    h1 = jnp.dot(x, w1_ref[...], preferred_element_type=jnp.float32)
    h1 = jnp.maximum(h1 + b1_ref[...].astype(jnp.float32), 0.0)

    # Linear(5, 20) + ReLU
    h2 = jnp.dot(h1.astype(w2_ref.dtype), w2_ref[...],
                 preferred_element_type=jnp.float32)
    h2 = jnp.maximum(h2 + b2_ref[...].astype(jnp.float32), 0.0)

    # Linear(20, num_classes)
    logits = jnp.dot(h2.astype(w3_ref.dtype), w3_ref[...],
                     preferred_element_type=jnp.float32)
    logits = logits + b3_ref[...].astype(jnp.float32)

    # Dropout(p=0.3): identity in eval mode.

    # Softmax(dim=1), numerically stabilized; reciprocal on the EUP.
    m = jnp.max(logits, axis=1, keepdims=True)
    e = jnp.exp(logits - m)
    denom = jnp.sum(e, axis=1, keepdims=True)
    o_ref[...] = (e * pl.reciprocal(denom, approx=True)).astype(o_ref.dtype)


def my_nn_module_forward(x, params, *, tb=1024, use_bf16=False):
    """x: (B, num_inputs) float32; params: dict of W1,b1,W2,b2,W3,b3.

    Weights are stored transposed vs PyTorch, i.e. (in_features, out_features),
    so the kernel computes y = x @ W + b directly on the MXU.
    """
    w1, b1 = params["W1"], params["b1"]
    w2, b2 = params["W2"], params["b2"]
    w3, b3 = params["W3"], params["b3"]

    B, num_inputs = x.shape
    num_classes = w3.shape[1]

    # Batch tile: multiple of 8 (sublane), capped at `tb` (keeps double-buffered
    # x + lane-padded intermediates far under the scoped-VMEM limit on all
    # generations, including v7x's 64 MiB physical VMEM).
    TB = min(_round_up(tb, 8), _round_up(B, 8))
    Bp = _round_up(B, TB)
    if Bp != B:
        x = jnp.pad(x, ((0, Bp - B), (0, 0)))

    if use_bf16:
        # Narrow only the MXU-streamed operands; biases / elementwise stay f32.
        x = x.astype(jnp.bfloat16)
        w1 = w1.astype(jnp.bfloat16)
        w2 = w2.astype(jnp.bfloat16)
        w3 = w3.astype(jnp.bfloat16)

    grid = (Bp // TB,)

    # Weights / biases: full-array blocks with a constant index_map -> resident
    # in VMEM, DMA'd once for the whole grid.
    resident = lambda a: pl.BlockSpec(a.shape, lambda i: (0,) * a.ndim)

    weight_bytes = sum(int(a.size) * a.dtype.itemsize
                       for a in (w1, b1, w2, b2, w3, b3))
    cost = pl.CostEstimate(
        flops=2 * Bp * (num_inputs * 5 + 5 * 20 + 20 * num_classes),
        transcendentals=Bp * num_classes,
        bytes_accessed=(Bp * num_inputs * x.dtype.itemsize
                        + Bp * num_classes * 4
                        + weight_bytes),
    )

    out = pl.pallas_call(
        _mlp_softmax_kernel,
        out_shape=jax.ShapeDtypeStruct((Bp, num_classes), jnp.float32),
        grid=grid,
        in_specs=[
            pl.BlockSpec((TB, num_inputs), lambda i: (i, 0)),   # x: batch-tiled
            resident(w1), resident(b1),
            resident(w2), resident(b2),
            resident(w3), resident(b3),
        ],
        out_specs=pl.BlockSpec((TB, num_classes), lambda i: (i, 0)),
        compiler_params=pltpu.CompilerParams(
            dimension_semantics=("parallel",)),                 # v7x megacore
        cost_estimate=cost,
    )(x, w1, b1, w2, b2, w3, b3)

    return out[:B]


def init_params(key, num_inputs, num_classes):
    ks = jax.random.split(key, 6)

    def lin(kw, kb, fan_in, fan_out):
        bound = 1.0 / jnp.sqrt(fan_in)
        W = jax.random.uniform(kw, (fan_in, fan_out), jnp.float32, -bound, bound)
        b = jax.random.uniform(kb, (1, fan_out), jnp.float32, -bound, bound)
        return W, b

    W1, b1 = lin(ks[0], ks[1], num_inputs, 5)
    W2, b2 = lin(ks[2], ks[3], 5, 20)
    W3, b3 = lin(ks[4], ks[5], 20, num_classes)
    return {"W1": W1, "b1": b1, "W2": W2, "b2": b2, "W3": W3, "b3": b3}


def _reference_forward(x, params):
    h1 = jnp.maximum(x @ params["W1"] + params["b1"], 0.0)
    h2 = jnp.maximum(h1 @ params["W2"] + params["b2"], 0.0)
    logits = h2 @ params["W3"] + params["b3"]
    return jax.nn.softmax(logits, axis=1)


if __name__ == "__main__":
    key = jax.random.PRNGKey(0)
    k_x, k_p = jax.random.split(key)

    # Small demo shapes; B deliberately not a multiple of 8 to exercise the
    # padding/slicing path of the batch-tiled grid.
    B, num_inputs, num_classes = 10, 32, 10
    x = jax.random.normal(k_x, (B, num_inputs), jnp.float32)
    params = init_params(k_p, num_inputs, num_classes)

    fwd = jax.jit(functools.partial(my_nn_module_forward, tb=1024,
                                    use_bf16=False))
    out = jax.block_until_ready(fwd(x, params))

    assert out.shape == (B, num_classes)
    # approx reciprocal -> rows sum to 1 only to ~1e-3 relative.
    assert jnp.allclose(jnp.sum(out, axis=1), 1.0, atol=5e-3)
    ref = _reference_forward(x, params)
    assert jnp.allclose(out, ref, atol=2e-3, rtol=1e-2)

    print("KERNEL_OK")
</pallas_src>

<mosaic_0001>
module attributes {stable_mosaic.version = 11 : i64} {
  func.func @_mlp_softmax_kernel(%arg0: i32, %arg1: memref<16x32xf32, #tpu.memory_space<vmem>>, %arg2: memref<32x5xf32, #tpu.memory_space<vmem>>, %arg3: memref<1x5xf32, #tpu.memory_space<vmem>>, %arg4: memref<5x20xf32, #tpu.memory_space<vmem>>, %arg5: memref<1x20xf32, #tpu.memory_space<vmem>>, %arg6: memref<20x10xf32, #tpu.memory_space<vmem>>, %arg7: memref<1x10xf32, #tpu.memory_space<vmem>>, %arg8: memref<16x10xf32, #tpu.memory_space<vmem>>) attributes {dimension_semantics = [#tpu.dimension_semantics<parallel>], iteration_bounds = array<i64: 1>, scalar_prefetch = 0 : i64, scratch_operands = 0 : i64, tpu.core_type = #tpu.core_type<tc>, window_params = [{transform_indices = @transform_0, window_bounds = array<i64: 16, 32>}, {pipeline_mode = #tpu.pipeline_mode<synchronous>, transform_indices = @transform_1, window_bounds = array<i64: 32, 5>}, {pipeline_mode = #tpu.pipeline_mode<synchronous>, transform_indices = @transform_2, window_bounds = array<i64: 1, 5>}, {pipeline_mode = #tpu.pipeline_mode<synchronous>, transform_indices = @transform_3, window_bounds = array<i64: 5, 20>}, {pipeline_mode = #tpu.pipeline_mode<synchronous>, transform_indices = @transform_4, window_bounds = array<i64: 1, 20>}, {pipeline_mode = #tpu.pipeline_mode<synchronous>, transform_indices = @transform_5, window_bounds = array<i64: 20, 10>}, {pipeline_mode = #tpu.pipeline_mode<synchronous>, transform_indices = @transform_6, window_bounds = array<i64: 1, 10>}, {transform_indices = @transform_7, window_bounds = array<i64: 16, 10>}]} {
    %c0 = arith.constant 0 : index
    %c0_0 = arith.constant 0 : index
    %0 = vector.load %arg1[%c0, %c0_0] : memref<16x32xf32, #tpu.memory_space<vmem>>, vector<16x32xf32>
    %c0_1 = arith.constant 0 : index
    %c0_2 = arith.constant 0 : index
    %1 = vector.load %arg2[%c0_1, %c0_2] : memref<32x5xf32, #tpu.memory_space<vmem>>, vector<32x5xf32>
    %cst = arith.constant dense<0.000000e+00> : vector<16x5xf32>
    %2 = tpu.matmul %0, %1, %cst {dimension_numbers = #tpu.dot_dimension_numbers<[1], [0], [0], [1], [0, 0, 1, 1], [], []>} : vector<16x32xf32>, vector<32x5xf32>, vector<16x5xf32> -> vector<16x5xf32>
    %c0_3 = arith.constant 0 : index
    %c0_4 = arith.constant 0 : index
    %3 = vector.load %arg3[%c0_3, %c0_4] : memref<1x5xf32, #tpu.memory_space<vmem>>, vector<1x5xf32>
    %4 = vector.broadcast %3 : vector<1x5xf32> to vector<16x5xf32>
    %5 = arith.addf %2, %4 : vector<16x5xf32>
    %cst_5 = arith.constant 0.000000e+00 : f32
    %6 = vector.broadcast %cst_5 : f32 to vector<16x5xf32>
    %7 = arith.maximumf %5, %6 : vector<16x5xf32>
    %c0_6 = arith.constant 0 : index
    %c0_7 = arith.constant 0 : index
    %8 = vector.load %arg4[%c0_6, %c0_7] : memref<5x20xf32, #tpu.memory_space<vmem>>, vector<5x20xf32>
    %cst_8 = arith.constant dense<0.000000e+00> : vector<16x20xf32>
    %9 = tpu.matmul %7, %8, %cst_8 {dimension_numbers = #tpu.dot_dimension_numbers<[1], [0], [0], [1], [0, 0, 1, 1], [], []>} : vector<16x5xf32>, vector<5x20xf32>, vector<16x20xf32> -> vector<16x20xf32>
    %c0_9 = arith.constant 0 : index
    %c0_10 = arith.constant 0 : index
    %10 = vector.load %arg5[%c0_9, %c0_10] : memref<1x20xf32, #tpu.memory_space<vmem>>, vector<1x20xf32>
    %11 = vector.broadcast %10 : vector<1x20xf32> to vector<16x20xf32>
    %12 = arith.addf %9, %11 : vector<16x20xf32>
    %cst_11 = arith.constant 0.000000e+00 : f32
    %13 = vector.broadcast %cst_11 : f32 to vector<16x20xf32>
    %14 = arith.maximumf %12, %13 : vector<16x20xf32>
    %c0_12 = arith.constant 0 : index
    %c0_13 = arith.constant 0 : index
    %15 = vector.load %arg6[%c0_12, %c0_13] : memref<20x10xf32, #tpu.memory_space<vmem>>, vector<20x10xf32>
    %cst_14 = arith.constant dense<0.000000e+00> : vector<16x10xf32>
    %16 = tpu.matmul %14, %15, %cst_14 {dimension_numbers = #tpu.dot_dimension_numbers<[1], [0], [0], [1], [0, 0, 1, 1], [], []>} : vector<16x20xf32>, vector<20x10xf32>, vector<16x10xf32> -> vector<16x10xf32>
    %c0_15 = arith.constant 0 : index
    %c0_16 = arith.constant 0 : index
    %17 = vector.load %arg7[%c0_15, %c0_16] : memref<1x10xf32, #tpu.memory_space<vmem>>, vector<1x10xf32>
    %18 = vector.broadcast %17 : vector<1x10xf32> to vector<16x10xf32>
    %19 = arith.addf %16, %18 : vector<16x10xf32>
    %cst_17 = arith.constant dense<0xFF800000> : vector<16xf32>
    %20 = vector.multi_reduction <maximumf>, %19, %cst_17 [1] : vector<16x10xf32> to vector<16xf32>
    %21 = vector.shape_cast %20 : vector<16xf32> to vector<16x1xf32>
    %22 = vector.broadcast %21 : vector<16x1xf32> to vector<16x10xf32>
    %23 = arith.subf %19, %22 : vector<16x10xf32>
    %24 = math.exp %23 : vector<16x10xf32>
    %cst_18 = arith.constant dense<0.000000e+00> : vector<16xf32>
    %25 = vector.multi_reduction <add>, %24, %cst_18 [1] : vector<16x10xf32> to vector<16xf32>
    %26 = vector.shape_cast %25 : vector<16xf32> to vector<16x1xf32>
    %27 = tpu.reciprocal %26 {approx = true} : vector<16x1xf32> -> vector<16x1xf32>
    %28 = vector.broadcast %27 : vector<16x1xf32> to vector<16x10xf32>
    %29 = arith.mulf %24, %28 : vector<16x10xf32>
    %c0_19 = arith.constant 0 : index
    %c0_20 = arith.constant 0 : index
    %30 = vector.load %arg8[%c0_19, %c0_20] : memref<16x10xf32, #tpu.memory_space<vmem>>, vector<16x10xf32>
    tpu.vector_store %arg8[%c0_19, %c0_20], %29 {strides = array<i32>} : memref<16x10xf32, #tpu.memory_space<vmem>>, vector<16x10xf32>,
    return
  }
  func.func @transform_0(%arg0: i32) -> (i32, i32) {
    %c0_i32 = arith.constant 0 : i32
    %c0_i32_0 = arith.constant 0 : i32
    return %arg0, %c0_i32 : i32, i32
  }
  func.func @transform_1(%arg0: i32) -> (i32, i32) {
    %c0_i32 = arith.constant 0 : i32
    %c0_i32_0 = arith.constant 0 : i32
    %c0_i32_1 = arith.constant 0 : i32
    return %c0_i32, %c0_i32_0 : i32, i32
  }
  func.func @transform_2(%arg0: i32) -> (i32, i32) {
    %c0_i32 = arith.constant 0 : i32
    %c0_i32_0 = arith.constant 0 : i32
    %c0_i32_1 = arith.constant 0 : i32
    return %c0_i32, %c0_i32_0 : i32, i32
  }
  func.func @transform_3(%arg0: i32) -> (i32, i32) {
    %c0_i32 = arith.constant 0 : i32
    %c0_i32_0 = arith.constant 0 : i32
    %c0_i32_1 = arith.constant 0 : i32
    return %c0_i32, %c0_i32_0 : i32, i32
  }
  func.func @transform_4(%arg0: i32) -> (i32, i32) {
    %c0_i32 = arith.constant 0 : i32
    %c0_i32_0 = arith.constant 0 : i32
    %c0_i32_1 = arith.constant 0 : i32
    return %c0_i32, %c0_i32_0 : i32, i32
  }
  func.func @transform_5(%arg0: i32) -> (i32, i32) {
    %c0_i32 = arith.constant 0 : i32
    %c0_i32_0 = arith.constant 0 : i32
    %c0_i32_1 = arith.constant 0 : i32
    return %c0_i32, %c0_i32_0 : i32, i32
  }
  func.func @transform_6(%arg0: i32) -> (i32, i32) {
    %c0_i32 = arith.constant 0 : i32
    %c0_i32_0 = arith.constant 0 : i32
    %c0_i32_1 = arith.constant 0 : i32
    return %c0_i32, %c0_i32_0 : i32, i32
  }
  func.func @transform_7(%arg0: i32) -> (i32, i32) {
    %c0_i32 = arith.constant 0 : i32
    %c0_i32_0 = arith.constant 0 : i32
    return %arg0, %c0_i32 : i32, i32
  }
}

</mosaic_0001>

<llo_original>
// kernel: my_nn_module_forward.1
$region0: #{my_nn_module_forward.1}
  #allocation0 [shape = 'u32[]', space=smem, size = 0x4, offset = 0x4, fixed_abs, tag = 'smem constant byte address 0x4 - core index']
  #allocation1 [shape = 'u32[144,128]{1,0:T(1,128)}', space=vmem, size = 0x12000, scoped, tag = 'internal scratch']
  %s0 = inlined_call_operand.vmem [shape: f32[16,32], index: 0, kind: input, shape index: {}]
  %s1 = inlined_call_operand.vmem [shape: f32[32,5], index: 1, kind: input, shape index: {}]
  %s2 = inlined_call_operand.vmem [shape: f32[1,5], index: 2, kind: input, shape index: {}]
  %s3 = inlined_call_operand.vmem [shape: f32[5,20], index: 3, kind: input, shape index: {}]
  %s4 = inlined_call_operand.vmem [shape: f32[1,20], index: 4, kind: input, shape index: {}]
  %s5 = inlined_call_operand.vmem [shape: f32[20,10], index: 5, kind: input, shape index: {}]
  %s6 = inlined_call_operand.vmem [shape: f32[1,10], index: 6, kind: input, shape index: {}]
  %s7 = inlined_call_operand.hbm [shape: f32[16,10], index: 7, kind: output, shape index: {}]
  %s8 = sld [smem:[#allocation0]]
  $region38: #{my_nn_module_forward.1} parent=0
    _
  %s10 = ssub.s32 1, %s8
  %s11 = scalar_select 0, %s10, %s8
  $region1: #{my_nn_module_forward.1} parent=0
    #allocation2 [shape = 'u8[8192]{0}', space=vmem, size = 0x2000, scoped, tag = 'output window, operand 0, single buffered']
    #allocation3 [shape = 's32[1]{0}', space=sflag, size = 0x4, scoped, tag = 'scoped memory for my_nn_module_forward.1']
    %12 = vsyncpa [#allocation3], 0
    // Predicated region
    $region2: #{my_nn_module_forward.1} parent=1 // pred_check
      _
    $region3: #{my_nn_module_forward.1} parent=1 // pred_check_branch
      %14 = sbr.rel (0) target = $region5
    $region4: #{my_nn_module_forward.1} parent=1 // pred_region
      _
    $region5: #{my_nn_module_forward.1} parent=1 // pred_fallthru
      _
    // Predicated region
    $region6: #{my_nn_module_forward.1} parent=1 // pred_check
      _
    $region7: #{my_nn_module_forward.1} parent=1 // pred_check_branch
      %16 = sbr.rel (0) target = $region9
    $region8: #{my_nn_module_forward.1} parent=1 // pred_region
      _
    $region9: #{my_nn_module_forward.1} parent=1 // pred_fallthru
      _
    // Predicated region
    $region10: #{my_nn_module_forward.1} parent=1 // pred_check
      _
    $region11: #{my_nn_module_forward.1} parent=1 // pred_check_branch
      %18 = sbr.rel (0) target = $region13
    $region12: #{my_nn_module_forward.1} parent=1 // pred_region
      _
    $region13: #{my_nn_module_forward.1} parent=1 // pred_fallthru
      _
    // Predicated region
    $region14: #{my_nn_module_forward.1} parent=1 // pred_check
      _
    $region15: #{my_nn_module_forward.1} parent=1 // pred_check_branch
      %20 = sbr.rel (0) target = $region17
    $region16: #{my_nn_module_forward.1} parent=1 // pred_region
      _
    $region17: #{my_nn_module_forward.1} parent=1 // pred_fallthru
      _
    // Predicated region
    $region18: #{my_nn_module_forward.1} parent=1 // pred_check
      _
    $region19: #{my_nn_module_forward.1} parent=1 // pred_check_branch
      %22 = sbr.rel (0) target = $region21
    $region20: #{my_nn_module_forward.1} parent=1 // pred_region
      _
    $region21: #{my_nn_module_forward.1} parent=1 // pred_fallthru
      _
    // Predicated region
    $region22: #{my_nn_module_forward.1} parent=1 // pred_check
      _
    $region23: #{my_nn_module_forward.1} parent=1 // pred_check_branch
      %24 = sbr.rel (0) target = $region25
    $region24: #{my_nn_module_forward.1} parent=1 // pred_region
      _
    $region25: #{my_nn_module_forward.1} parent=1 // pred_fallthru
      _
    // Predicated region
    $region26: #{my_nn_module_forward.1} parent=1 // pred_check
      _
    $region27: #{my_nn_module_forward.1} parent=1 // pred_check_branch
      %26 = sbr.rel (0) target = $region29
    $region28: #{my_nn_module_forward.1} parent=1 // pred_region
      _
    $region29: #{my_nn_module_forward.1} parent=1 // pred_fallthru
      _
    %v27 = vld [vmem:[%s0] sm:$0xff]
    %v28 = vld [vmem:[%s0 + $0x8] sm:$0xff]
    %v29 = vld [vmem:[%s1] sm:$0xff]
    %v30 = vld [vmem:[%s1 + $0x8] sm:$0xff]
    %v31 = vld [vmem:[%s1 + $0x10] sm:$0xff]
    %v32 = vld [vmem:[%s1 + $0x18] sm:$0xff]
    %v33 = vld [vmem:[%s2] sm:$0x1]
    %v35 = vlaneseq
    %v36 = vshrl.u32 %v35, 7
    %v37 = vsub.s32 0, %v36
    %v38 = vrot.slane %v33, %v37
    %vm40 = vcmask 261120
    %v42 = vsel %vm40, %v27, 0
    %v45 = vsel %vm40, %v28, 0
    %47 = vmatprep.subr.mxu0 0.0
    %48 = vmatpush1.msra.mxu0 %v29
    %49 = vmatprep.subr.mxu0 0.0
    %50 = vmatpush1.msra.mxu0 %v30
    %51 = vmatprep.subr.mxu0 0.0
    %52 = vmatpush1.msra.mxu0 %v31
    %53 = vmatprep.subr.mxu0 0.0
    %54 = vmatpush1.msra.mxu0 %v32
    %55 = vmatprep.subr.mxu0 0.0
    %56 = vmatpush1.msra.mxu0 0.0
    %57 = vmatprep.subr.mxu0 0.0
    %58 = vmatpush1.msra.mxu0 0.0
    %59 = vmatprep.subr.mxu0 0.0
    %60 = vmatpush1.msra.mxu0 0.0
    %61 = vmatprep.subr.mxu0 0.0
    %62 = vmatpush1.msra.mxu0 0.0
    %63 = vmatprep.subr.mxu0 0.0
    %64 = vmatpush1.msra.mxu0 0.0
    %65 = vmatprep.subr.mxu0 0.0
    %66 = vmatpush1.msra.mxu0 0.0
    %67 = vmatprep.subr.mxu0 0.0
    %68 = vmatpush1.msra.mxu0 0.0
    %69 = vmatprep.subr.mxu0 0.0
    %70 = vmatpush1.msra.mxu0 0.0
    %71 = vmatprep.subr.mxu0 0.0
    %72 = vmatpush1.msra.mxu0 0.0
    %73 = vmatprep.subr.mxu0 0.0
    %74 = vmatpush1.msra.mxu0 0.0
    %75 = vmatprep.subr.mxu0 0.0
    %76 = vmatpush1.msra.mxu0 0.0
    %77 = vmatprep.subr.mxu0 0.0
    %78 = vmatpush1.msra.mxu0 0.0
    %79 = vmatprep.subr.mxu0 0.0
    %80 = vmatpush1.msra.mxu0 0.0
    %81 = vmatprep.subr.mxu0 0.0
    %82 = vmatpush1.msra.mxu0 0.0
    %83 = vmatprep.subr.mxu0 0.0
    %84 = vmatpush1.msra.mxu0 0.0
    %85 = vmatprep.subr.mxu0 0.0
    %86 = vmatpush1.msra.mxu0 0.0
    %87 = vmatprep.subr.mxu0 0.0
    %88 = vmatpush1.msra.mxu0 0.0
    %89 = vmatprep.subr.mxu0 0.0
    %90 = vmatpush1.msra.mxu0 0.0
    %91 = vmatprep.subr.mxu0 0.0
    %92 = vmatpush1.msra.mxu0 0.0
    %93 = vmatprep.subr.mxu0 0.0
    %94 = vmatpush1.msra.mxu0 0.0
    %95 = vmatprep.subr.mxu0 0.0
    %96 = vmatpush1.msra.mxu0 0.0
    %97 = vmatprep.subr.mxu0 0.0
    %98 = vmatpush1.msra.mxu0 0.0
    %99 = vmatprep.subr.mxu0 0.0
    %100 = vmatpush1.msra.mxu0 0.0
    %101 = vmatprep.subr.mxu0 0.0
    %102 = vmatpush1.msra.mxu0 0.0
    %103 = vmatprep.subr.mxu0 0.0
    %104 = vmatpush1.msra.mxu0 0.0
    %105 = vmatprep.subr.mxu0 0.0
    %106 = vmatpush1.msra.mxu0 0.0
    %107 = vmatprep.subr.mxu0 0.0
    %108 = vmatpush1.msra.mxu0 0.0
    %109 = vmatprep.subr.mxu0 0.0
    %110 = vmatpush1.msra.mxu0 0.0
    %111 = vmatprep.mubr.f32.mxu0 0.0
    %112 = vmatmul.mubr.f32.gmra.mrb[0].mxu0 %v42
    %v113 = vpop.f32.mrb[0].mxu0
    %v114 = vadd.f32 %v38, %v113
    %v115 = vpop.f32.mrb[0].mxu0
    %116 = vmatprep.mubr.f32.mxu0 0.0
    %117 = vmatmul.mubr.f32.gmra.mrb[0].mxu0 %v45
    %v118 = vpop.f32.mrb[0].mxu0
    %v119 = vadd.f32 %v38, %v118
    %v120 = vpop.f32.mrb[0].mxu0
    %121 = vdwg.mxu0
    %v122 = vmax.f32 %v114, 0.0
    %v123 = vmax.f32 %v119, 0.0
    %v124 = vld [vmem:[%s3] sm:$0x1f]
    %v125 = vld [vmem:[%s4] sm:$0x1]
    %v127 = vlaneseq
    %v128 = vshrl.u32 %v127, 7
    %v129 = vsub.s32 0, %v128
    %v130 = vrot.slane %v125, %v129
    %vm132 = vcmask 39936
    %v134 = vsel %vm132, %v122, 0
    %v137 = vsel %vm132, %v123, 0
    %vm139 = vcmask 1044480
    %v141 = vsel %vm139, %v124, 0
    %143 = vmatprep.subr.mxu0 0.0
    %144 = vmatpush1.msra.mxu0 %v141
    %145 = vmatprep.subr.mxu0 0.0
    %146 = vmatpush1.msra.mxu0 0.0
    %147 = vmatprep.subr.mxu0 0.0
    %148 = vmatpush1.msra.mxu0 0.0
    %149 = vmatprep.subr.mxu0 0.0
    %150 = vmatpush1.msra.mxu0 0.0
    %151 = vmatprep.subr.mxu0 0.0
    %152 = vmatpush1.msra.mxu0 0.0
    %153 = vmatprep.subr.mxu0 0.0
    %154 = vmatpush1.msra.mxu0 0.0
    %155 = vmatprep.subr.mxu0 0.0
    %156 = vmatpush1.msra.mxu0 0.0
    %157 = vmatprep.subr.mxu0 0.0
    %158 = vmatpush1.msra.mxu0 0.0
    %159 = vmatprep.subr.mxu0 0.0
    %160 = vmatpush1.msra.mxu0 0.0
    %161 = vmatprep.subr.mxu0 0.0
    %162 = vmatpush1.msra.mxu0 0.0
    %163 = vmatprep.subr.mxu0 0.0
    %164 = vmatpush1.msra.mxu0 0.0
    %165 = vmatprep.subr.mxu0 0.0
    %166 = vmatpush1.msra.mxu0 0.0
    %167 = vmatprep.subr.mxu0 0.0
    %168 = vmatpush1.msra.mxu0 0.0
    %169 = vmatprep.subr.mxu0 0.0
    %170 = vmatpush1.msra.mxu0 0.0
    %171 = vmatprep.subr.mxu0 0.0
    %172 = vmatpush1.msra.mxu0 0.0
    %173 = vmatprep.subr.mxu0 0.0
    %174 = vmatpush1.msra.mxu0 0.0
    %175 = vmatprep.subr.mxu0 0.0
    %176 = vmatpush1.msra.mxu0 0.0
    %177 = vmatprep.subr.mxu0 0.0
    %178 = vmatpush1.msra.mxu0 0.0
    %179 = vmatprep.subr.mxu0 0.0
    %180 = vmatpush1.msra.mxu0 0.0
    %181 = vmatprep.subr.mxu0 0.0
    %182 = vmatpush1.msra.mxu0 0.0
    %183 = vmatprep.subr.mxu0 0.0
    %184 = vmatpush1.msra.mxu0 0.0
    %185 = vmatprep.subr.mxu0 0.0
    %186 = vmatpush1.msra.mxu0 0.0
    %187 = vmatprep.subr.mxu0 0.0
    %188 = vmatpush1.msra.mxu0 0.0
    %189 = vmatprep.subr.mxu0 0.0
    %190 = vmatpush1.msra.mxu0 0.0
    %191 = vmatprep.subr.mxu0 0.0
    %192 = vmatpush1.msra.mxu0 0.0
    %193 = vmatprep.subr.mxu0 0.0
    %194 = vmatpush1.msra.mxu0 0.0
    %195 = vmatprep.subr.mxu0 0.0
    %196 = vmatpush1.msra.mxu0 0.0
    %197 = vmatprep.subr.mxu0 0.0
    %198 = vmatpush1.msra.mxu0 0.0
    %199 = vmatprep.subr.mxu0 0.0
    %200 = vmatpush1.msra.mxu0 0.0
    %201 = vmatprep.subr.mxu0 0.0
    %202 = vmatpush1.msra.mxu0 0.0
    %203 = vmatprep.subr.mxu0 0.0
    %204 = vmatpush1.msra.mxu0 0.0
    %205 = vmatprep.subr.mxu0 0.0
    %206 = vmatpush1.msra.mxu0 0.0
    %207 = vmatprep.mubr.f32.mxu0 0.0
    %208 = vmatmul.mubr.f32.gmra.mrb[0].mxu0 %v134
    %v209 = vpop.f32.mrb[0].mxu0
    %v210 = vadd.f32 %v130, %v209
    %v211 = vpop.f32.mrb[0].mxu0
    %212 = vmatprep.mubr.f32.mxu0 0.0
    %213 = vmatmul.mubr.f32.gmra.mrb[0].mxu0 %v137
    %v214 = vpop.f32.mrb[0].mxu0
    %v215 = vadd.f32 %v130, %v214
    %v216 = vpop.f32.mrb[0].mxu0
    %217 = vdwg.mxu0
    %v218 = vmax.f32 %v210, 0.0
    %v219 = vmax.f32 %v215, 0.0
    %v220 = vld [vmem:[%s5] sm:$0xff]
    %v221 = vld [vmem:[%s5 + $0x8] sm:$0xff]
    %v222 = vld [vmem:[%s5 + $0x10] sm:$0xf]
    %v223 = vld [vmem:[%s6] sm:$0x1]
    %v225 = vlaneseq
    %v226 = vshrl.u32 %v225, 7
    %v227 = vsub.s32 0, %v226
    %v228 = vrot.slane %v223, %v227
    %vm230 = vcmask 162816
    %v232 = vsel %vm230, %v218, 0
    %v235 = vsel %vm230, %v219, 0
    %vm237 = vcmask 1043456
    %v239 = vsel %vm237, %v222, 0
    %241 = vmatprep.subr.mxu0 0.0
    %242 = vmatpush1.msra.mxu0 %v220
    %243 = vmatprep.subr.mxu0 0.0
    %244 = vmatpush1.msra.mxu0 %v221
    %245 = vmatprep.subr.mxu0 0.0
    %246 = vmatpush1.msra.mxu0 %v239
    %247 = vmatprep.subr.mxu0 0.0
    %248 = vmatpush1.msra.mxu0 0.0
    %249 = vmatprep.subr.mxu0 0.0
    %250 = vmatpush1.msra.mxu0 0.0
    %251 = vmatprep.subr.mxu0 0.0
    %252 = vmatpush1.msra.mxu0 0.0
    %253 = vmatprep.subr.mxu0 0.0
    %254 = vmatpush1.msra.mxu0 0.0
    %255 = vmatprep.subr.mxu0 0.0
    %256 = vmatpush1.msra.mxu0 0.0
    %257 = vmatprep.subr.mxu0 0.0
    %258 = vmatpush1.msra.mxu0 0.0
    %259 = vmatprep.subr.mxu0 0.0
    %260 = vmatpush1.msra.mxu0 0.0
    %261 = vmatprep.subr.mxu0 0.0
    %262 = vmatpush1.msra.mxu0 0.0
    %263 = vmatprep.subr.mxu0 0.0
    %264 = vmatpush1.msra.mxu0 0.0
    %265 = vmatprep.subr.mxu0 0.0
    %266 = vmatpush1.msra.mxu0 0.0
    %267 = vmatprep.subr.mxu0 0.0
    %268 = vmatpush1.msra.mxu0 0.0
    %269 = vmatprep.subr.mxu0 0.0
    %270 = vmatpush1.msra.mxu0 0.0
    %271 = vmatprep.subr.mxu0 0.0
    %272 = vmatpush1.msra.mxu0 0.0
    %273 = vmatprep.subr.mxu0 0.0
    %274 = vmatpush1.msra.mxu0 0.0
    %275 = vmatprep.subr.mxu0 0.0
    %276 = vmatpush1.msra.mxu0 0.0
    %277 = vmatprep.subr.mxu0 0.0
    %278 = vmatpush1.msra.mxu0 0.0
    %279 = vmatprep.subr.mxu0 0.0
    %280 = vmatpush1.msra.mxu0 0.0
    %281 = vmatprep.subr.mxu0 0.0
    %282 = vmatpush1.msra.mxu0 0.0
    %283 = vmatprep.subr.mxu0 0.0
    %284 = vmatpush1.msra.mxu0 0.0
    %285 = vmatprep.subr.mxu0 0.0
    %286 = vmatpush1.msra.mxu0 0.0
    %287 = vmatprep.subr.mxu0 0.0
    %288 = vmatpush1.msra.mxu0 0.0
    %289 = vmatprep.subr.mxu0 0.0
    %290 = vmatpush1.msra.mxu0 0.0
    %291 = vmatprep.subr.mxu0 0.0
    %292 = vmatpush1.msra.mxu0 0.0
    %293 = vmatprep.subr.mxu0 0.0
    %294 = vmatpush1.msra.mxu0 0.0
    %295 = vmatprep.subr.mxu0 0.0
    %296 = vmatpush1.msra.mxu0 0.0
    %297 = vmatprep.subr.mxu0 0.0
    %298 = vmatpush1.msra.mxu0 0.0
    %299 = vmatprep.subr.mxu0 0.0
    %300 = vmatpush1.msra.mxu0 0.0
    %301 = vmatprep.subr.mxu0 0.0
    %302 = vmatpush1.msra.mxu0 0.0
    %303 = vmatprep.subr.mxu0 0.0
    %304 = vmatpush1.msra.mxu0 0.0
    %305 = vmatprep.mubr.f32.mxu0 0.0
    %306 = vmatmul.mubr.f32.gmra.mrb[0].mxu0 %v232
    %v307 = vpop.f32.mrb[0].mxu0
    %v308 = vadd.f32 %v228, %v307
    %v309 = vpop.f32.mrb[0].mxu0
    %310 = vmatprep.mubr.f32.mxu0 0.0
    %311 = vmatmul.mubr.f32.gmra.mrb[0].mxu0 %v235
    %v312 = vpop.f32.mrb[0].mxu0
    %v313 = vadd.f32 %v228, %v312
    %v314 = vpop.f32.mrb[0].mxu0
    %315 = vdwg.mxu0
    %vm316 = vcmask 80896
    %v317 = vsel %vm316, %v308, -inf
    %318 = vmax.xlane.f32.xlu0 %v317
    %v319 = vpop.xlane.xlu0 %318
    %v320 = vsel %vm316, %v313, -inf
    %321 = vmax.xlane.f32.xlu0 %v320
    %v322 = vpop.xlane.xlu0 %321
    %v323 = vsub.f32 %v308, %v319
    %v324 = vsub.f32 %v313, %v322
    %v325 = vmul.f32 %v323, 1.442695
    %v326 = vpow.pop %v325
    %v327 = vmul.f32 %v324, 1.442695
    %v328 = vpow.pop %v327
    %v329 = vsel %vm316, %v326, 0.0
    %330 = vadd.xlane.f32.xlu0 %v329
    %v331 = vpop.xlane.xlu0 %330
    %v332 = vsel %vm316, %v328, 0.0
    %333 = vadd.xlane.f32.xlu0 %v332
    %v334 = vpop.xlane.xlu0 %333
    %v335 = vrcp.pop %v331
    %v336 = vrcp.pop %v334
    %v337 = vmul.f32 %v326, %v335
    %v338 = vmul.f32 %v328, %v336
    %339 = vst.msk [vmem:[#allocation2] sm:$0xff] %vm316, %v337
    %340 = vst.msk [vmem:[#allocation2 + $0x8] sm:$0xff] %vm316, %v338
    // Predicated region
    $region30: #{my_nn_module_forward.1} parent=1 // pred_check
      _
    $region31: #{my_nn_module_forward.1} parent=1 // pred_check_branch
      %342 = sbr.rel (0) target = $region33
    $region32: #{my_nn_module_forward.1} parent=1 // pred_region
      %s344 = ssub.s32 256, 256
      %345 = vsyncadd [#allocation3], %s344
      %s346 = sshll.u32 [#allocation2], 4
      %s347 = int_to_ptr.vmem [resolvable:$true] %s346
      %352 = dma.vmem_to_hbm [thread:$0]  %s347, 256, %s7, [#allocation3], 128, 128, 8
    $region33: #{my_nn_module_forward.1} parent=1 // pred_fallthru
      _
    // Predicated region
    $region34: #{my_nn_module_forward.1} parent=1 // pred_check
      _
    $region35: #{my_nn_module_forward.1} parent=1 // pred_check_branch
      %354 = sbr.rel (0) target = $region37
    $region36: #{my_nn_module_forward.1} parent=1 // pred_region
      %355 = dma.done [#allocation3], 256
    $region37: #{my_nn_module_forward.1} parent=1 // pred_fallthru
      _
    %356 = vsyncpa [#allocation3], 1

</llo_original>
